<compile_context>
chip_gen: v6e
topology: v6e:2x2x1
jax: 0.10.0
libtpu: 0.0.40
codegen_flags: <defaults>
</compile_context>

<pallas_src>
import functools
import math

import jax
import jax.numpy as jnp
from jax.experimental import pallas as pl
from jax.experimental.pallas import tpu as pltpu

PHI = (1 + math.sqrt(5)) / 2
LAMBDA = 1 / PHI


def _round_up(n, m):
    return ((n + m - 1) // m) * m


def _vmem_capacity_bytes():
    """Per-core VMEM capacity; conservative fallback if the query fails."""
    try:
        return int(pltpu.get_tpu_info().vmem_capacity_bytes)
    except Exception:
        return 64 << 20  # conservative (v7x-sized)


def _phi_ffn_kernel(x_ref, wu_ref, bu_ref, wd_ref, bd_ref, out_ref,
                    *, inter_pad, d_pad):
    """One grid step = one tile of token rows; fused weights fully resident."""
    x_in = x_ref[...]                                       # (tm, d_pad) native dtype
    x_f32 = x_in.astype(jnp.float32)
    x_bf = x_in.astype(jnp.bfloat16)

    # Fused up-projection: [ linear1 | fib_gate1 ] -> (tm, 2*inter_pad) f32
    up = jnp.dot(x_bf, wu_ref[...],
                 preferred_element_type=jnp.float32) + bu_ref[...]

    # Per-half activation math (avoids a full-width (tm, 2*inter_pad) sigmoid temp).
    lin = up[:, :inter_pad]                                  # lane-aligned free views
    gpre = up[:, inter_pad:]
    h1 = jnp.tanh(lin) * PHI + jax.nn.sigmoid(lin) * LAMBDA
    gate1 = jax.nn.sigmoid(gpre)
    h1_gated = (h1 * gate1).astype(jnp.bfloat16)             # (tm, inter_pad) bf16

    # Fused down-projection: [ linear2 | fib_gate2 ] -> (tm, 2*d_pad) f32
    down = jnp.dot(h1_gated, wd_ref[...],
                   preferred_element_type=jnp.float32) + bd_ref[...]
    h2 = down[:, :d_pad]
    gate2 = jax.nn.sigmoid(down[:, d_pad:])

    out_ref[...] = (x_f32 + h2 * gate2).astype(out_ref.dtype)


def pack_params(params, d_pad, inter_pad, weight_dtype=jnp.bfloat16):
    """Pad to lane-aligned shapes and fuse [linear|gate] weight pairs.

    Invariant: all padding is zeros (padded input rows, padded output columns,
    padded bias entries) so padded inter columns contribute nothing after the
    down projection.
    """
    def pad2(a, rows, cols):
        return jnp.pad(a, ((0, rows - a.shape[0]), (0, cols - a.shape[1])))

    w_up = jnp.concatenate(
        [pad2(params["w1"], d_pad, inter_pad),
         pad2(params["wg1"], d_pad, inter_pad)], axis=1).astype(weight_dtype)
    b_up = jnp.concatenate(
        [pad2(params["b1"], 1, inter_pad),
         pad2(params["bg1"], 1, inter_pad)], axis=1).astype(jnp.float32)
    w_dn = jnp.concatenate(
        [pad2(params["w2"], inter_pad, d_pad),
         pad2(params["wg2"], inter_pad, d_pad)], axis=1).astype(weight_dtype)
    b_dn = jnp.concatenate(
        [pad2(params["b2"], 1, d_pad),
         pad2(params["bg2"], 1, d_pad)], axis=1).astype(jnp.float32)
    return w_up, b_up, w_dn, b_dn


def phi_harmonic_feed_forward(x, params, *, tm=None, weight_dtype=jnp.bfloat16):
    """x: (..., d_model). params: dict of pre-transposed (in, out) weights."""
    d_model = x.shape[-1]
    orig_shape = x.shape
    in_dtype = x.dtype
    x2 = x.reshape(-1, d_model)                               # keep native dtype
    M = x2.shape[0]

    inter = params["w1"].shape[1]
    d_pad = _round_up(d_model, 128)
    inter_pad = _round_up(inter, 128)

    vmem_cap = _vmem_capacity_bytes()

    # Row tile: chip-aware default (smaller on 64-MiB VMEM parts), never below
    # the (8, ·) constraint, no larger than the 8-aligned token count.
    if tm is None:
        tm = 128 if vmem_cap <= (64 << 20) else 256
    tm_eff = min(tm, _round_up(M, 8))
    M_pad = _round_up(M, tm_eff)

    # Skip wrapper-side padding (an extra HBM read+write) when already aligned.
    needs_pad = (M_pad != M) or (d_pad != d_model)
    x_p = jnp.pad(x2, ((0, M_pad - M), (0, d_pad - d_model))) if needs_pad else x2

    w_up, b_up, w_dn, b_dn = pack_params(params, d_pad, inter_pad, weight_dtype)

    grid = (M_pad // tm_eff,)
    kernel = functools.partial(_phi_ffn_kernel, inter_pad=inter_pad, d_pad=d_pad)

    # VMEM budget: single-buffered resident fused weights, double-buffered io
    # tiles, f32 temps.  Cap at physical per-core capacity minus headroom.
    act_itemsize = jnp.dtype(in_dtype).itemsize
    w_bytes = (w_up.size * w_up.dtype.itemsize + w_dn.size * w_dn.dtype.itemsize
               + (b_up.size + b_dn.size) * 4)                 # Buffered(1): no doubling
    io_bytes = 2 * 2 * tm_eff * d_pad * act_itemsize          # x + out, double-buffered
    tmp_bytes = (3 * tm_eff * 2 * inter_pad * 4               # up / h1*gate1 / h1_gated
                 + 2 * tm_eff * 2 * d_pad * 4)                 # down / residual math
    est = w_bytes + io_bytes + tmp_bytes
    cap = max(16 << 20, vmem_cap - (8 << 20))
    vmem_limit = int(min(max(32 << 20, int(est * 1.3) + (4 << 20)), cap))

    cost = pl.CostEstimate(
        flops=8 * M_pad * d_pad * inter_pad,
        transcendentals=M_pad * (3 * inter_pad + d_pad),
        bytes_accessed=w_bytes + 2 * M_pad * d_pad * act_itemsize,
    )

    resident = pl.Buffered(1)   # constant-index operands: no dead second buffer

    out = pl.pallas_call(
        kernel,
        out_shape=jax.ShapeDtypeStruct((M_pad, d_pad), in_dtype),
        grid_spec=pl.GridSpec(
            grid=grid,
            in_specs=[
                pl.BlockSpec((tm_eff, d_pad), lambda i: (i, 0)),          # x tile
                pl.BlockSpec((d_pad, 2 * inter_pad), lambda i: (0, 0),
                             pipeline_mode=resident),                     # fused up weights
                pl.BlockSpec((1, 2 * inter_pad), lambda i: (0, 0),
                             pipeline_mode=resident),                     # fused up bias
                pl.BlockSpec((inter_pad, 2 * d_pad), lambda i: (0, 0),
                             pipeline_mode=resident),                     # fused down weights
                pl.BlockSpec((1, 2 * d_pad), lambda i: (0, 0),
                             pipeline_mode=resident),                     # fused down bias
            ],
            out_specs=pl.BlockSpec((tm_eff, d_pad), lambda i: (i, 0)),
        ),
        compiler_params=pltpu.CompilerParams(
            dimension_semantics=("parallel",),
            vmem_limit_bytes=vmem_limit),
        cost_estimate=cost,
    )(x_p, w_up, b_up, w_dn, b_dn)

    if needs_pad:
        out = out[:M, :d_model]
    return out.reshape(orig_shape)


def init_params(key, d_model):
    """Deterministic init mimicking nn.Linear's uniform(-1/sqrt(fan_in), ...)."""
    inter = int(d_model * PHI ** 2)

    def linear(k, fan_in, fan_out):
        bound = 1.0 / math.sqrt(fan_in)
        kw, kb = jax.random.split(k)
        # stored pre-transposed: (in, out) so the kernel does x @ W + b
        w = jax.random.uniform(kw, (fan_in, fan_out), jnp.float32, -bound, bound)
        b = jax.random.uniform(kb, (1, fan_out), jnp.float32, -bound, bound)
        return w, b

    k1, k2, k3, k4 = jax.random.split(key, 4)
    w1, b1 = linear(k1, d_model, inter)
    wg1, bg1 = linear(k3, d_model, inter)
    w2, b2 = linear(k2, inter, d_model)
    wg2, bg2 = linear(k4, inter, d_model)
    return dict(w1=w1, b1=b1, wg1=wg1, bg1=bg1,
                w2=w2, b2=b2, wg2=wg2, bg2=bg2)


def phi_ffn_reference(x, params, compute_dtype=jnp.bfloat16):
    """Pure-JAX reference (same bf16 matmul inputs / f32 accumulation as kernel)."""
    d_model = x.shape[-1]
    x2 = x.reshape(-1, d_model).astype(jnp.float32)

    def mm(a, w):
        return jnp.dot(a.astype(compute_dtype), w.astype(compute_dtype),
                       preferred_element_type=jnp.float32)

    h1_pre = mm(x2, params["w1"]) + params["b1"]
    h1 = jnp.tanh(h1_pre) * PHI + jax.nn.sigmoid(h1_pre) * LAMBDA
    gate1 = jax.nn.sigmoid(mm(x2, params["wg1"]) + params["bg1"])
    h1_gated = h1 * gate1
    h2 = mm(h1_gated.astype(jnp.float32), params["w2"]) + params["b2"]
    gate2 = jax.nn.sigmoid(mm(h1_gated.astype(jnp.float32), params["wg2"]) + params["bg2"])
    return (x2 + h2 * gate2).reshape(x.shape).astype(x.dtype)


if __name__ == "__main__":
    batch, seq, d_model = 2, 8, 32     # intermediate_dim = int(32 * PHI^2) = 83
    key = jax.random.PRNGKey(0)
    kx, kp = jax.random.split(key)

    x = jax.random.normal(kx, (batch, seq, d_model), dtype=jnp.float32)
    params = init_params(kp, d_model)

    out = phi_harmonic_feed_forward(x, params)
    out = jax.block_until_ready(out)

    ref = phi_ffn_reference(x, params)
    assert out.shape == x.shape
    assert jnp.allclose(out.astype(jnp.float32), ref.astype(jnp.float32),
                        atol=2e-3, rtol=2e-3), "mismatch vs reference"

    print("KERNEL_OK")
</pallas_src>

<mosaic_0001>
module attributes {stable_mosaic.version = 11 : i64} {
  func.func @_phi_ffn_kernel(%arg0: i32, %arg1: memref<16x128xf32, #tpu.memory_space<vmem>>, %arg2: memref<128x256xbf16, #tpu.memory_space<vmem>>, %arg3: memref<1x256xf32, #tpu.memory_space<vmem>>, %arg4: memref<128x256xbf16, #tpu.memory_space<vmem>>, %arg5: memref<1x256xf32, #tpu.memory_space<vmem>>, %arg6: memref<16x128xf32, #tpu.memory_space<vmem>>) attributes {dimension_semantics = [#tpu.dimension_semantics<parallel>], iteration_bounds = array<i64: 1>, scalar_prefetch = 0 : i64, scratch_operands = 0 : i64, tpu.core_type = #tpu.core_type<tc>, window_params = [{transform_indices = @transform_0, window_bounds = array<i64: 16, 128>}, {pipeline_mode = #tpu.pipeline_mode<synchronous>, transform_indices = @transform_1, window_bounds = array<i64: 128, 256>}, {pipeline_mode = #tpu.pipeline_mode<synchronous>, transform_indices = @transform_2, window_bounds = array<i64: 1, 256>}, {pipeline_mode = #tpu.pipeline_mode<synchronous>, transform_indices = @transform_3, window_bounds = array<i64: 128, 256>}, {pipeline_mode = #tpu.pipeline_mode<synchronous>, transform_indices = @transform_4, window_bounds = array<i64: 1, 256>}, {transform_indices = @transform_5, window_bounds = array<i64: 16, 128>}]} {
    %c0 = arith.constant 0 : index
    %c0_0 = arith.constant 0 : index
    %0 = vector.load %arg1[%c0, %c0_0] : memref<16x128xf32, #tpu.memory_space<vmem>>, vector<16x128xf32>
    %1 = arith.truncf %0 : vector<16x128xf32> to vector<16x128xbf16>
    %c0_1 = arith.constant 0 : index
    %c0_2 = arith.constant 0 : index
    %2 = vector.load %arg2[%c0_1, %c0_2] : memref<128x256xbf16, #tpu.memory_space<vmem>>, vector<128x256xbf16>
    %cst = arith.constant dense<0.000000e+00> : vector<16x256xf32>
    %3 = tpu.matmul %1, %2, %cst {dimension_numbers = #tpu.dot_dimension_numbers<[1], [0], [0], [1], [0, 0, 1, 1], [], []>} : vector<16x128xbf16>, vector<128x256xbf16>, vector<16x256xf32> -> vector<16x256xf32>
    %c0_3 = arith.constant 0 : index
    %c0_4 = arith.constant 0 : index
    %4 = vector.load %arg3[%c0_3, %c0_4] : memref<1x256xf32, #tpu.memory_space<vmem>>, vector<1x256xf32>
    %5 = vector.broadcast %4 : vector<1x256xf32> to vector<16x256xf32>
    %6 = arith.addf %3, %5 : vector<16x256xf32>
    %7 = vector.extract_strided_slice %6 {offsets = [0, 0], sizes = [16, 128], strides = [1, 1]} : vector<16x256xf32> to vector<16x128xf32>
    %8 = vector.extract_strided_slice %6 {offsets = [0, 128], sizes = [16, 128], strides = [1, 1]} : vector<16x256xf32> to vector<16x128xf32>
    %9 = math.tanh %7 : vector<16x128xf32>
    %cst_5 = arith.constant 1.61803401 : f32
    %10 = vector.broadcast %cst_5 : f32 to vector<16x128xf32>
    %11 = arith.mulf %9, %10 : vector<16x128xf32>
    %12 = arith.negf %7 : vector<16x128xf32>
    %13 = math.exp %12 : vector<16x128xf32>
    %cst_6 = arith.constant 1.000000e+00 : f32
    %14 = vector.broadcast %cst_6 : f32 to vector<16x128xf32>
    %15 = arith.addf %14, %13 : vector<16x128xf32>
    %16 = arith.divf %14, %15 : vector<16x128xf32>
    %cst_7 = arith.constant 6.180340e-01 : f32
    %17 = vector.broadcast %cst_7 : f32 to vector<16x128xf32>
    %18 = arith.mulf %16, %17 : vector<16x128xf32>
    %19 = arith.addf %11, %18 : vector<16x128xf32>
    %20 = arith.negf %8 : vector<16x128xf32>
    %21 = math.exp %20 : vector<16x128xf32>
    %cst_8 = arith.constant 1.000000e+00 : f32
    %22 = vector.broadcast %cst_8 : f32 to vector<16x128xf32>
    %23 = arith.addf %22, %21 : vector<16x128xf32>
    %24 = arith.divf %22, %23 : vector<16x128xf32>
    %25 = arith.mulf %19, %24 : vector<16x128xf32>
    %26 = arith.truncf %25 : vector<16x128xf32> to vector<16x128xbf16>
    %c0_9 = arith.constant 0 : index
    %c0_10 = arith.constant 0 : index
    %27 = vector.load %arg4[%c0_9, %c0_10] : memref<128x256xbf16, #tpu.memory_space<vmem>>, vector<128x256xbf16>
    %cst_11 = arith.constant dense<0.000000e+00> : vector<16x256xf32>
    %28 = tpu.matmul %26, %27, %cst_11 {dimension_numbers = #tpu.dot_dimension_numbers<[1], [0], [0], [1], [0, 0, 1, 1], [], []>} : vector<16x128xbf16>, vector<128x256xbf16>, vector<16x256xf32> -> vector<16x256xf32>
    %c0_12 = arith.constant 0 : index
    %c0_13 = arith.constant 0 : index
    %29 = vector.load %arg5[%c0_12, %c0_13] : memref<1x256xf32, #tpu.memory_space<vmem>>, vector<1x256xf32>
    %30 = vector.broadcast %29 : vector<1x256xf32> to vector<16x256xf32>
    %31 = arith.addf %28, %30 : vector<16x256xf32>
    %32 = vector.extract_strided_slice %31 {offsets = [0, 0], sizes = [16, 128], strides = [1, 1]} : vector<16x256xf32> to vector<16x128xf32>
    %33 = vector.extract_strided_slice %31 {offsets = [0, 128], sizes = [16, 128], strides = [1, 1]} : vector<16x256xf32> to vector<16x128xf32>
    %34 = arith.negf %33 : vector<16x128xf32>
    %35 = math.exp %34 : vector<16x128xf32>
    %cst_14 = arith.constant 1.000000e+00 : f32
    %36 = vector.broadcast %cst_14 : f32 to vector<16x128xf32>
    %37 = arith.addf %36, %35 : vector<16x128xf32>
    %38 = arith.divf %36, %37 : vector<16x128xf32>
    %39 = arith.mulf %32, %38 : vector<16x128xf32>
    %40 = arith.addf %0, %39 : vector<16x128xf32>
    %c0_15 = arith.constant 0 : index
    %c0_16 = arith.constant 0 : index
    %41 = vector.load %arg6[%c0_15, %c0_16] : memref<16x128xf32, #tpu.memory_space<vmem>>, vector<16x128xf32>
    tpu.vector_store %arg6[%c0_15, %c0_16], %40 {strides = array<i32>} : memref<16x128xf32, #tpu.memory_space<vmem>>, vector<16x128xf32>,
    return
  }
  func.func @transform_0(%arg0: i32) -> (i32, i32) {
    %c0_i32 = arith.constant 0 : i32
    %c0_i32_0 = arith.constant 0 : i32
    return %arg0, %c0_i32 : i32, i32
  }
  func.func @transform_1(%arg0: i32) -> (i32, i32) {
    %c0_i32 = arith.constant 0 : i32
    %c0_i32_0 = arith.constant 0 : i32
    %c0_i32_1 = arith.constant 0 : i32
    return %c0_i32, %c0_i32_0 : i32, i32
  }
  func.func @transform_2(%arg0: i32) -> (i32, i32) {
    %c0_i32 = arith.constant 0 : i32
    %c0_i32_0 = arith.constant 0 : i32
    %c0_i32_1 = arith.constant 0 : i32
    return %c0_i32, %c0_i32_0 : i32, i32
  }
  func.func @transform_3(%arg0: i32) -> (i32, i32) {
    %c0_i32 = arith.constant 0 : i32
    %c0_i32_0 = arith.constant 0 : i32
    %c0_i32_1 = arith.constant 0 : i32
    return %c0_i32, %c0_i32_0 : i32, i32
  }
  func.func @transform_4(%arg0: i32) -> (i32, i32) {
    %c0_i32 = arith.constant 0 : i32
    %c0_i32_0 = arith.constant 0 : i32
    %c0_i32_1 = arith.constant 0 : i32
    return %c0_i32, %c0_i32_0 : i32, i32
  }
  func.func @transform_5(%arg0: i32) -> (i32, i32) {
    %c0_i32 = arith.constant 0 : i32
    %c0_i32_0 = arith.constant 0 : i32
    return %arg0, %c0_i32 : i32, i32
  }
}

</mosaic_0001>

<llo_original>
// kernel: tpu_custom_call.1
$region0: #{tpu_custom_call.1}
  #allocation0 [shape = 'u32[]', space=smem, size = 0x4, offset = 0x4, fixed_abs, tag = 'smem constant byte address 0x4 - core index']
  #allocation1 [shape = 'u32[144,128]{1,0:T(1,128)}', space=vmem, size = 0x12000, scoped, tag = 'internal scratch']
  %s0 = inlined_call_operand.hbm [shape: f32[16,128], index: 0, kind: input, shape index: {}]
  %s1 = inlined_call_operand.hbm [shape: bf16[128,256], index: 1, kind: input, shape index: {}]
  %s2 = inlined_call_operand.vmem [shape: f32[1,256], index: 2, kind: input, shape index: {}]
  %s3 = inlined_call_operand.hbm [shape: bf16[128,256], index: 3, kind: input, shape index: {}]
  %s4 = inlined_call_operand.vmem [shape: f32[1,256], index: 4, kind: input, shape index: {}]
  %s5 = inlined_call_operand.hbm [shape: f32[16,128], index: 5, kind: output, shape index: {}]
  %s6 = sld [smem:[#allocation0]]
  $region42: #{tpu_custom_call.1} parent=0
    _
  %s8 = ssub.s32 1, %s6
  %s9 = scalar_select 0, %s8, %s6
  $region1: #{tpu_custom_call.1} parent=0
    #allocation2 [shape = 'u8[8192]{0}', space=vmem, size = 0x2000, scoped, tag = 'input window, operand 0, single buffered']
    #allocation3 [shape = 's32[1]{0}', space=sflag, size = 0x4, scoped, tag = 'scoped memory for tpu_custom_call.1']
    #allocation4 [shape = 's32[1]{0}', space=sflag, size = 0x4, scoped, tag = 'scoped memory for tpu_custom_call.1']
    #allocation5 [shape = 'u8[65536]{0}', space=vmem, size = 0x10000, scoped, tag = 'input window, operand 1, single buffered']
    #allocation6 [shape = 's32[1]{0}', space=sflag, size = 0x4, scoped, tag = 'scoped memory for tpu_custom_call.1']
    #allocation7 [shape = 'u8[65536]{0}', space=vmem, size = 0x10000, scoped, tag = 'input window, operand 3, single buffered']
    #allocation8 [shape = 'u8[8192]{0}', space=vmem, size = 0x2000, scoped, tag = 'output window, operand 0, single buffered']
    %10 = vsyncpa [#allocation3], 0
    %11 = vsyncpa [#allocation6], 0
    %12 = vsyncpa [#allocation4], 0
    // Predicated region
    $region2: #{tpu_custom_call.1} parent=1 // pred_check
      _
    $region3: #{tpu_custom_call.1} parent=1 // pred_check_branch
      %14 = sbr.rel (0) target = $region5
    $region4: #{tpu_custom_call.1} parent=1 // pred_region
      %s16 = ssub.s32 256, 256
      %17 = vsyncadd [#allocation3], %s16
      %s18 = sshll.u32 [#allocation2], 4
      %s19 = int_to_ptr.vmem [resolvable:$true] %s18
      %24 = dma.hbm_to_vmem [thread:$0]  %s0, 256, %s19, [#allocation3], 128, 128, 8
    $region5: #{tpu_custom_call.1} parent=1 // pred_fallthru
      _
    // Predicated region
    $region6: #{tpu_custom_call.1} parent=1 // pred_check
      _
    $region7: #{tpu_custom_call.1} parent=1 // pred_check_branch
      %26 = sbr.rel (0) target = $region9
    $region8: #{tpu_custom_call.1} parent=1 // pred_region
      %s28 = ssub.s32 2048, 2048
      %29 = vsyncadd [#allocation6], %s28
      %s30 = sshll.u32 [#allocation5], 4
      %s31 = int_to_ptr.vmem [resolvable:$true] %s30
      %36 = dma.hbm_to_vmem [thread:$0]  %s1, 2048, %s31, [#allocation6], 128, 128, 8
    $region9: #{tpu_custom_call.1} parent=1 // pred_fallthru
      _
    // Predicated region
    $region10: #{tpu_custom_call.1} parent=1 // pred_check
      _
    $region11: #{tpu_custom_call.1} parent=1 // pred_check_branch
      %38 = sbr.rel (0) target = $region13
    $region12: #{tpu_custom_call.1} parent=1 // pred_region
      _
    $region13: #{tpu_custom_call.1} parent=1 // pred_fallthru
      _
    // Predicated region
    $region14: #{tpu_custom_call.1} parent=1 // pred_check
      _
    $region15: #{tpu_custom_call.1} parent=1 // pred_check_branch
      %40 = sbr.rel (0) target = $region17
    $region16: #{tpu_custom_call.1} parent=1 // pred_region
      %s42 = ssub.s32 2048, 2048
      %43 = vsyncadd [#allocation6], %s42
      %s44 = sshll.u32 [#allocation7], 4
      %s45 = int_to_ptr.vmem [resolvable:$true] %s44
      %50 = dma.hbm_to_vmem [thread:$0]  %s3, 2048, %s45, [#allocation6], 128, 128, 8
    $region17: #{tpu_custom_call.1} parent=1 // pred_fallthru
      _
    // Predicated region
    $region18: #{tpu_custom_call.1} parent=1 // pred_check
      _
    $region19: #{tpu_custom_call.1} parent=1 // pred_check_branch
      %52 = sbr.rel (0) target = $region21
    $region20: #{tpu_custom_call.1} parent=1 // pred_region
      _
    $region21: #{tpu_custom_call.1} parent=1 // pred_fallthru
      _
    // Predicated region
    $region22: #{tpu_custom_call.1} parent=1 // pred_check
      _
    $region23: #{tpu_custom_call.1} parent=1 // pred_check_branch
      %54 = sbr.rel (0) target = $region25
    $region24: #{tpu_custom_call.1} parent=1 // pred_region
      %55 = dma.done [#allocation3], 256
    $region25: #{tpu_custom_call.1} parent=1 // pred_fallthru
      _
    // Predicated region
    $region26: #{tpu_custom_call.1} parent=1 // pred_check
      _
    $region27: #{tpu_custom_call.1} parent=1 // pred_check_branch
      %57 = sbr.rel (0) target = $region29
    $region28: #{tpu_custom_call.1} parent=1 // pred_region
      %58 = dma.done [#allocation6], 2048
    $region29: #{tpu_custom_call.1} parent=1 // pred_fallthru
      _
    // Predicated region
    $region30: #{tpu_custom_call.1} parent=1 // pred_check
      _
    $region31: #{tpu_custom_call.1} parent=1 // pred_check_branch
      %60 = sbr.rel (0) target = $region33
    $region32: #{tpu_custom_call.1} parent=1 // pred_region
      %61 = dma.done [#allocation6], 2048
    $region33: #{tpu_custom_call.1} parent=1 // pred_fallthru
      _
    %v63 = vld [vmem:[#allocation2] sm:$0xff]
    %v64 = vld [vmem:[#allocation2 + $0x8] sm:$0xff]
    %v65 = vpack.c.bf16 %v64, %v63
    %v66 = vld [vmem:[#allocation5] sm:$0xff]
    %v67 = vld [vmem:[#allocation5 + $0x8] sm:$0xff]
    %v68 = vld [vmem:[#allocation5 + $0x10] sm:$0xff]
    %v69 = vld [vmem:[#allocation5 + $0x18] sm:$0xff]
    %v70 = vld [vmem:[#allocation5 + $0x20] sm:$0xff]
    %v71 = vld [vmem:[#allocation5 + $0x28] sm:$0xff]
    %v72 = vld [vmem:[#allocation5 + $0x30] sm:$0xff]
    %v73 = vld [vmem:[#allocation5 + $0x38] sm:$0xff]
    %v74 = vld [vmem:[#allocation5 + $0x40] sm:$0xff]
    %v75 = vld [vmem:[#allocation5 + $0x48] sm:$0xff]
    %v76 = vld [vmem:[#allocation5 + $0x50] sm:$0xff]
    %v77 = vld [vmem:[#allocation5 + $0x58] sm:$0xff]
    %v78 = vld [vmem:[#allocation5 + $0x60] sm:$0xff]
    %v79 = vld [vmem:[#allocation5 + $0x68] sm:$0xff]
    %v80 = vld [vmem:[#allocation5 + $0x70] sm:$0xff]
    %v81 = vld [vmem:[#allocation5 + $0x78] sm:$0xff]
    %v82 = vld [vmem:[%s2] sm:$0x3]
    %v84 = vlaneseq
    %v85 = vshrl.u32 %v84, 7
    %v86 = vsub.s32 0, %v85
    %v87 = vrot.slane %v82, %v86
    %v88 = vlaneseq
    %v89 = vshrl.u32 %v88, 7
    %v90 = vsub.s32 1, %v89
    %v91 = vrot.slane %v82, %v90
    %v110 = vunpack.c.l.b16 %v66
    %v111 = vunpack.c.h.b16 %v66
    %v112 = vunpack.c.l.b16 %v67
    %v113 = vunpack.c.h.b16 %v67
    %v114 = vunpack.c.l.b16 %v68
    %v115 = vunpack.c.h.b16 %v68
    %v116 = vunpack.c.l.b16 %v69
    %v117 = vunpack.c.h.b16 %v69
    %v118 = vunpack.c.l.b16 %v70
    %v119 = vunpack.c.h.b16 %v70
    %v120 = vunpack.c.l.b16 %v71
    %v121 = vunpack.c.h.b16 %v71
    %v122 = vunpack.c.l.b16 %v72
    %v123 = vunpack.c.h.b16 %v72
    %v124 = vunpack.c.l.b16 %v73
    %v125 = vunpack.c.h.b16 %v73
    %v126 = vunpack.c.l.b16 %v74
    %v127 = vunpack.c.h.b16 %v74
    %v128 = vunpack.c.l.b16 %v75
    %v129 = vunpack.c.h.b16 %v75
    %v130 = vunpack.c.l.b16 %v76
    %v131 = vunpack.c.h.b16 %v76
    %v132 = vunpack.c.l.b16 %v77
    %v133 = vunpack.c.h.b16 %v77
    %v134 = vunpack.c.l.b16 %v78
    %v135 = vunpack.c.h.b16 %v78
    %v136 = vunpack.c.l.b16 %v79
    %v137 = vunpack.c.h.b16 %v79
    %v138 = vunpack.c.l.b16 %v80
    %v139 = vunpack.c.h.b16 %v80
    %v140 = vunpack.c.l.b16 %v81
    %v141 = vunpack.c.h.b16 %v81
    %v142 = vpack.c.b16 %v112, %v110
    %v143 = vpack.c.b16 %v113, %v111
    %v144 = vpack.c.b16 %v116, %v114
    %v145 = vpack.c.b16 %v117, %v115
    %v146 = vpack.c.b16 %v120, %v118
    %v147 = vpack.c.b16 %v121, %v119
    %v148 = vpack.c.b16 %v124, %v122
    %v149 = vpack.c.b16 %v125, %v123
    %v150 = vpack.c.b16 %v128, %v126
    %v151 = vpack.c.b16 %v129, %v127
    %v152 = vpack.c.b16 %v132, %v130
    %v153 = vpack.c.b16 %v133, %v131
    %v154 = vpack.c.b16 %v136, %v134
    %v155 = vpack.c.b16 %v137, %v135
    %v156 = vpack.c.b16 %v140, %v138
    %v157 = vpack.c.b16 %v141, %v139
    %174 = vmatprep.subr.bf16.mxu0 %v157
    %175 = vmatpush1.bf16.msra.mxu0 %v156
    %176 = vmatprep.subr.bf16.mxu0 %v155
    %177 = vmatpush1.bf16.msra.mxu0 %v154
    %178 = vmatprep.subr.bf16.mxu0 %v153
    %179 = vmatpush1.bf16.msra.mxu0 %v152
    %180 = vmatprep.subr.bf16.mxu0 %v151
    %181 = vmatpush1.bf16.msra.mxu0 %v150
    %182 = vmatprep.subr.bf16.mxu0 %v149
    %183 = vmatpush1.bf16.msra.mxu0 %v148
    %184 = vmatprep.subr.bf16.mxu0 %v147
    %185 = vmatpush1.bf16.msra.mxu0 %v146
    %186 = vmatprep.subr.bf16.mxu0 %v145
    %187 = vmatpush1.bf16.msra.mxu0 %v144
    %188 = vmatprep.subr.bf16.mxu0 %v143
    %189 = vmatpush1.bf16.msra.mxu0 %v142
    %190 = vmatprep.subr.bf16.mxu0 0
    %191 = vmatpush2.bf16.msra.mxu0 0
    %192 = vmatprep.subr.bf16.mxu0 0
    %193 = vmatpush2.bf16.msra.mxu0 0
    %194 = vmatprep.subr.bf16.mxu0 0
    %195 = vmatpush2.bf16.msra.mxu0 0
    %196 = vmatprep.subr.bf16.mxu0 0
    %197 = vmatpush2.bf16.msra.mxu0 0
    %198 = vmatprep.subr.bf16.mxu0 0
    %199 = vmatpush2.bf16.msra.mxu0 0
    %200 = vmatprep.subr.bf16.mxu0 0
    %201 = vmatpush2.bf16.msra.mxu0 0
    %202 = vmatprep.subr.bf16.mxu0 0
    %203 = vmatpush2.bf16.msra.mxu0 0
    %204 = vmatprep.subr.bf16.mxu0 0
    %205 = vmatpush2.bf16.msra.mxu0 0
    %206 = vmatprep.mubr.bf16.mxu0 0
    %207 = vmatmul.mubr.bf16.gmra.mxu0 %v65
    %v208 = vpop.f32.mrf.mxu0
    %v209 = vadd.f32 %v87, %v208
    %v210 = vpop.f32.mrf.mxu0
    %v211 = vadd.f32 %v91, %v210
    %v212 = vpop.f32.mrf.mxu0
    %v213 = vadd.f32 %v87, %v212
    %v214 = vpop.f32.mrf.mxu0
    %v215 = vadd.f32 %v91, %v214
    %216 = vdwg.mxu0
    %v217 = vtanh.pop %v209
    %v218 = vtanh.pop %v213
    %v219 = vmul.f32 %v217, 1.618034
    %v220 = vmul.f32 %v218, 1.618034
    %v221 = vxor.u32 %v209, 2147483648
    %v222 = vxor.u32 %v213, 2147483648
    %v223 = vmul.f32 %v221, 1.442695
    %v224 = vpow.pop %v223
    %v225 = vmul.f32 %v222, 1.442695
    %v226 = vpow.pop %v225
    %v227 = vadd.f32 %v224, 1.0
    %v228 = vadd.f32 %v226, 1.0
    %v229 = vrcp.pop %v227
    %v230 = vmul.f32 1.0, %v229
    %v231 = vrcp.pop %v228
    %v232 = vmul.f32 1.0, %v231
    %v233 = vmul.f32 %v230, 0.618034
    %v234 = vmul.f32 %v232, 0.618034
    %v235 = vadd.f32 %v219, %v233
    %v236 = vadd.f32 %v220, %v234
    %v237 = vxor.u32 %v211, 2147483648
    %v238 = vxor.u32 %v215, 2147483648
    %v239 = vmul.f32 %v237, 1.442695
    %v240 = vpow.pop %v239
    %v241 = vmul.f32 %v238, 1.442695
    %v242 = vpow.pop %v241
    %v243 = vadd.f32 %v240, 1.0
    %v244 = vadd.f32 %v242, 1.0
    %v245 = vrcp.pop %v243
    %v246 = vmul.f32 1.0, %v245
    %v247 = vrcp.pop %v244
    %v248 = vmul.f32 1.0, %v247
    %v249 = vmul.f32 %v235, %v246
    %v250 = vmul.f32 %v236, %v248
    %v251 = vpack.c.bf16 %v250, %v249
    %v252 = vld [vmem:[#allocation7] sm:$0xff]
    %v253 = vld [vmem:[#allocation7 + $0x8] sm:$0xff]
    %v254 = vld [vmem:[#allocation7 + $0x10] sm:$0xff]
    %v255 = vld [vmem:[#allocation7 + $0x18] sm:$0xff]
    %v256 = vld [vmem:[#allocation7 + $0x20] sm:$0xff]
    %v257 = vld [vmem:[#allocation7 + $0x28] sm:$0xff]
    %v258 = vld [vmem:[#allocation7 + $0x30] sm:$0xff]
    %v259 = vld [vmem:[#allocation7 + $0x38] sm:$0xff]
    %v260 = vld [vmem:[#allocation7 + $0x40] sm:$0xff]
    %v261 = vld [vmem:[#allocation7 + $0x48] sm:$0xff]
    %v262 = vld [vmem:[#allocation7 + $0x50] sm:$0xff]
    %v263 = vld [vmem:[#allocation7 + $0x58] sm:$0xff]
    %v264 = vld [vmem:[#allocation7 + $0x60] sm:$0xff]
    %v265 = vld [vmem:[#allocation7 + $0x68] sm:$0xff]
    %v266 = vld [vmem:[#allocation7 + $0x70] sm:$0xff]
    %v267 = vld [vmem:[#allocation7 + $0x78] sm:$0xff]
    %v268 = vld [vmem:[%s4] sm:$0x3]
    %v270 = vlaneseq
    %v271 = vshrl.u32 %v270, 7
    %v272 = vsub.s32 0, %v271
    %v273 = vrot.slane %v268, %v272
    %v274 = vlaneseq
    %v275 = vshrl.u32 %v274, 7
    %v276 = vsub.s32 1, %v275
    %v277 = vrot.slane %v268, %v276
    %v296 = vunpack.c.l.b16 %v252
    %v297 = vunpack.c.h.b16 %v252
    %v298 = vunpack.c.l.b16 %v253
    %v299 = vunpack.c.h.b16 %v253
    %v300 = vunpack.c.l.b16 %v254
    %v301 = vunpack.c.h.b16 %v254
    %v302 = vunpack.c.l.b16 %v255
    %v303 = vunpack.c.h.b16 %v255
    %v304 = vunpack.c.l.b16 %v256
    %v305 = vunpack.c.h.b16 %v256
    %v306 = vunpack.c.l.b16 %v257
    %v307 = vunpack.c.h.b16 %v257
    %v308 = vunpack.c.l.b16 %v258
    %v309 = vunpack.c.h.b16 %v258
    %v310 = vunpack.c.l.b16 %v259
    %v311 = vunpack.c.h.b16 %v259
    %v312 = vunpack.c.l.b16 %v260
    %v313 = vunpack.c.h.b16 %v260
    %v314 = vunpack.c.l.b16 %v261
    %v315 = vunpack.c.h.b16 %v261
    %v316 = vunpack.c.l.b16 %v262
    %v317 = vunpack.c.h.b16 %v262
    %v318 = vunpack.c.l.b16 %v263
    %v319 = vunpack.c.h.b16 %v263
    %v320 = vunpack.c.l.b16 %v264
    %v321 = vunpack.c.h.b16 %v264
    %v322 = vunpack.c.l.b16 %v265
    %v323 = vunpack.c.h.b16 %v265
    %v324 = vunpack.c.l.b16 %v266
    %v325 = vunpack.c.h.b16 %v266
    %v326 = vunpack.c.l.b16 %v267
    %v327 = vunpack.c.h.b16 %v267
    %v328 = vpack.c.b16 %v298, %v296
    %v329 = vpack.c.b16 %v299, %v297
    %v330 = vpack.c.b16 %v302, %v300
    %v331 = vpack.c.b16 %v303, %v301
    %v332 = vpack.c.b16 %v306, %v304
    %v333 = vpack.c.b16 %v307, %v305
    %v334 = vpack.c.b16 %v310, %v308
    %v335 = vpack.c.b16 %v311, %v309
    %v336 = vpack.c.b16 %v314, %v312
    %v337 = vpack.c.b16 %v315, %v313
    %v338 = vpack.c.b16 %v318, %v316
    %v339 = vpack.c.b16 %v319, %v317
    %v340 = vpack.c.b16 %v322, %v320
    %v341 = vpack.c.b16 %v323, %v321
    %v342 = vpack.c.b16 %v326, %v324
    %v343 = vpack.c.b16 %v327, %v325
    %360 = vmatprep.subr.bf16.mxu0 %v343
    %361 = vmatpush1.bf16.msra.mxu0 %v342
    %362 = vmatprep.subr.bf16.mxu0 %v341
    %363 = vmatpush1.bf16.msra.mxu0 %v340
    %364 = vmatprep.subr.bf16.mxu0 %v339
    %365 = vmatpush1.bf16.msra.mxu0 %v338
    %366 = vmatprep.subr.bf16.mxu0 %v337
    %367 = vmatpush1.bf16.msra.mxu0 %v336
    %368 = vmatprep.subr.bf16.mxu0 %v335
    %369 = vmatpush1.bf16.msra.mxu0 %v334
    %370 = vmatprep.subr.bf16.mxu0 %v333
    %371 = vmatpush1.bf16.msra.mxu0 %v332
    %372 = vmatprep.subr.bf16.mxu0 %v331
    %373 = vmatpush1.bf16.msra.mxu0 %v330
    %374 = vmatprep.subr.bf16.mxu0 %v329
    %375 = vmatpush1.bf16.msra.mxu0 %v328
    %376 = vmatprep.subr.bf16.mxu0 0
    %377 = vmatpush2.bf16.msra.mxu0 0
    %378 = vmatprep.subr.bf16.mxu0 0
    %379 = vmatpush2.bf16.msra.mxu0 0
    %380 = vmatprep.subr.bf16.mxu0 0
    %381 = vmatpush2.bf16.msra.mxu0 0
    %382 = vmatprep.subr.bf16.mxu0 0
    %383 = vmatpush2.bf16.msra.mxu0 0
    %384 = vmatprep.subr.bf16.mxu0 0
    %385 = vmatpush2.bf16.msra.mxu0 0
    %386 = vmatprep.subr.bf16.mxu0 0
    %387 = vmatpush2.bf16.msra.mxu0 0
    %388 = vmatprep.subr.bf16.mxu0 0
    %389 = vmatpush2.bf16.msra.mxu0 0
    %390 = vmatprep.subr.bf16.mxu0 0
    %391 = vmatpush2.bf16.msra.mxu0 0
    %392 = vmatprep.mubr.bf16.mxu0 0
    %393 = vmatmul.mubr.bf16.gmra.mxu0 %v251
    %v394 = vpop.f32.mrf.mxu0
    %v395 = vadd.f32 %v273, %v394
    %v396 = vpop.f32.mrf.mxu0
    %v397 = vadd.f32 %v277, %v396
    %v398 = vpop.f32.mrf.mxu0
    %v399 = vadd.f32 %v273, %v398
    %v400 = vpop.f32.mrf.mxu0
    %v401 = vadd.f32 %v277, %v400
    %402 = vdwg.mxu0
    %v403 = vxor.u32 %v397, 2147483648
    %v404 = vxor.u32 %v401, 2147483648
    %v405 = vmul.f32 %v403, 1.442695
    %v406 = vpow.pop %v405
    %v407 = vmul.f32 %v404, 1.442695
    %v408 = vpow.pop %v407
    %v409 = vadd.f32 %v406, 1.0
    %v410 = vadd.f32 %v408, 1.0
    %v411 = vrcp.pop %v409
    %v412 = vmul.f32 1.0, %v411
    %v413 = vrcp.pop %v410
    %v414 = vmul.f32 1.0, %v413
    %v415 = vmul.f32 %v395, %v412
    %v416 = vmul.f32 %v399, %v414
    %v417 = vadd.f32 %v63, %v415
    %v418 = vadd.f32 %v64, %v416
    %419 = vst [vmem:[#allocation8] sm:$0xff] %v417
    %420 = vst [vmem:[#allocation8 + $0x8] sm:$0xff] %v418
    // Predicated region
    $region34: #{tpu_custom_call.1} parent=1 // pred_check
      _
    $region35: #{tpu_custom_call.1} parent=1 // pred_check_branch
      %422 = sbr.rel (0) target = $region37
    $region36: #{tpu_custom_call.1} parent=1 // pred_region
      %s424 = ssub.s32 256, 256
      %425 = vsyncadd [#allocation4], %s424
      %s426 = sshll.u32 [#allocation8], 4
      %s427 = int_to_ptr.vmem [resolvable:$true] %s426
      %432 = dma.vmem_to_hbm [thread:$0]  %s427, 256, %s5, [#allocation4], 128, 128, 8
    $region37: #{tpu_custom_call.1} parent=1 // pred_fallthru
      _
    // Predicated region
    $region38: #{tpu_custom_call.1} parent=1 // pred_check
      _
    $region39: #{tpu_custom_call.1} parent=1 // pred_check_branch
      %434 = sbr.rel (0) target = $region41
    $region40: #{tpu_custom_call.1} parent=1 // pred_region
      %435 = dma.done [#allocation4], 256
    $region41: #{tpu_custom_call.1} parent=1 // pred_fallthru
      _
    %436 = vsyncpa [#allocation3], 1
    %437 = vsyncpa [#allocation6], 1
    %438 = vsyncpa [#allocation4], 1

</llo_original>
